<compile_context>
chip_gen: v5e
topology: v5e:2x2
jax: 0.10.0
libtpu: 0.0.40
codegen_flags: <defaults>
</compile_context>

<pallas_src>
import jax
import jax.numpy as jnp
from jax.experimental import pallas as pl
from jax.experimental.pallas import tpu as pltpu


def _round_up(x, m):
    return ((x + m - 1) // m) * m


def _patch_embed_kernel(x_ref, w_ref, b_ref, o_ref):
    # x_ref: (tm, K)   bf16 patch rows
    # w_ref: (K, te)   bf16 flattened conv weight
    # b_ref: (1, te)   f32 bias
    # o_ref: (tm, te)  output tile (bf16 by default; f32 accumulate inside)
    acc = jnp.dot(x_ref[...], w_ref[...], preferred_element_type=jnp.float32)
    o_ref[...] = (acc + b_ref[...]).astype(o_ref.dtype)


def patch_embeddings(x, conv_weight, conv_bias, patch_size, *, tm=1024,
                     te_max=2048, compute_dtype=jnp.bfloat16,
                     out_dtype=jnp.bfloat16):
    """x: (B, C, H, W), conv_weight: (E, C, P, P), conv_bias: (E,).

    Returns (B, N, E) with N = (H//P) * (W//P), matching the PyTorch module's
    forward.  Matmul operands are bf16 (MXU fast path), accumulation is f32;
    output dtype is configurable (default bf16 to halve the HBM writeback —
    pass out_dtype=jnp.float32 for bit-faithful-to-f32 callers).
    """
    B, C, H, W = x.shape
    E = conv_weight.shape[0]
    P = patch_size
    assert H % P == 0 and W % P == 0
    Hp, Wp = H // P, W // P
    N = Hp * Wp
    K = C * P * P
    M = B * N

    # --- tiling ---------------------------------------------------------
    # Rows of the patch matrix per grid step: as large as comfortably fits
    # VMEM, but clamp so the grid keeps >= 2 steps whenever M allows (lets
    # v7x's two TensorCores split the "parallel" M axis).  Keep it 8-aligned.
    tm_eff = min(tm, _round_up(max(1, -(-M // 2)), 8))
    M_pad = _round_up(M, tm_eff)              # no ragged / dropped tiles
    ni = M_pad // tm_eff

    # Embedding columns per grid step: lane-dense (multiple of 128).  For
    # E <= te_max there is a single E tile (weight fully resident across the
    # grid); for very large E we tile so VMEM stays bounded on v7x.
    E_pad = _round_up(max(E, 128), 128)
    nj = -(-E_pad // te_max)
    te = _round_up(-(-E_pad // nj), 128)
    E_pad = te * nj

    # --- glue: bf16 cast + patch extraction (pure layout, no compute) ----
    # allow_input_fusion below lets XLA fuse this cast/transpose/reshape into
    # the pallas_call input DMA so `patches` need not round-trip through HBM.
    x_c = x.astype(compute_dtype)
    # (B, C, Hp, P, Wp, P) -> (B, Hp, Wp, C, P, P) -> (M, K)
    patches = x_c.reshape(B, C, Hp, P, Wp, P)
    patches = patches.transpose(0, 2, 4, 1, 3, 5)
    patches = patches.reshape(M, K)
    if M_pad != M:
        patches = jnp.pad(patches, ((0, M_pad - M), (0, 0)))
    # TODO(synk): for patch sizes where K is far from a multiple of 128
    # (e.g. P=14 -> K=588) padding K can remove a ragged MXU pass; skipped
    # here because it adds bytes to the dominant (memory-bound) input stream.

    # conv weight (E, C, P, P) -> (K, E): rows match the patch flattening.
    w_mat = conv_weight.reshape(E, K).T.astype(compute_dtype)
    b_mat = conv_bias.reshape(1, E).astype(jnp.float32)
    if E_pad != E:
        w_mat = jnp.pad(w_mat, ((0, 0), (0, E_pad - E)))
        b_mat = jnp.pad(b_mat, ((0, 0), (0, E_pad - E)))

    # When there is a single E tile the weight / bias index maps are constant
    # -> they stay resident; a second pipeline buffer would be pure VMEM
    # waste (frees K*E_pad*2 bytes per core on v7x's 64 MiB VMEM).
    resident_kwargs = dict(pipeline_mode=pl.Buffered(1)) if nj == 1 else {}

    out_bytes = jnp.dtype(out_dtype).itemsize
    cost = pl.CostEstimate(
        flops=2 * M * K * E,
        transcendentals=0,
        bytes_accessed=M * K * 2 + K * E * 2 + M * E * out_bytes,
    )

    # --- hot path: tiled matmul + bias on the MXU ------------------------
    out = pl.pallas_call(
        _patch_embed_kernel,
        out_shape=jax.ShapeDtypeStruct((M_pad, E_pad), out_dtype),
        grid_spec=pltpu.PrefetchScalarGridSpec(
            num_scalar_prefetch=0,
            grid=(ni, nj),
            in_specs=[
                pl.BlockSpec((tm_eff, K), lambda i, j: (i, 0)),
                pl.BlockSpec((K, te), lambda i, j: (0, j), **resident_kwargs),
                pl.BlockSpec((1, te), lambda i, j: (0, j), **resident_kwargs),
            ],
            out_specs=pl.BlockSpec((tm_eff, te), lambda i, j: (i, j)),
        ),
        compiler_params=pltpu.CompilerParams(
            # Independent output tiles on both axes; on v7x the grid can be
            # split across the two TensorCores.
            dimension_semantics=("parallel", "parallel"),
            # Fuse the patch-extraction layout change into the input DMA for
            # operand 0 (the patch matrix); weight / bias are tiny.
            allow_input_fusion=[True, False, False],
        ),
        cost_estimate=cost,
    )(patches, w_mat, b_mat)

    # Strip padding, restore (B, N, E).
    return out[:M, :E].reshape(B, N, E)


def _reference(x, conv_weight, conv_bias, patch_size):
    """Pure-JAX f32 reference with the same semantics as the PyTorch module."""
    y = jax.lax.conv_general_dilated(
        x, conv_weight,
        window_strides=(patch_size, patch_size),
        padding="VALID",
        dimension_numbers=("NCHW", "OIHW", "NCHW"),
    ) + conv_bias[None, :, None, None]
    B, E, Hp, Wp = y.shape
    return y.reshape(B, E, Hp * Wp).transpose(0, 2, 1)


if __name__ == "__main__":
    # Small shapes consistent with the module's forward:
    #   batch=2, channels=3, image 16x16, patch_size=8, embedding_dim=32
    B, C, H, W = 2, 3, 16, 16
    P, E = 8, 32

    key = jax.random.PRNGKey(0)
    kx, kw, kb = jax.random.split(key, 3)
    x = jax.random.normal(kx, (B, C, H, W), dtype=jnp.float32)
    # Deterministic synthetic parameters (same shapes as nn.Conv2d would have).
    conv_weight = jax.random.normal(kw, (E, C, P, P), dtype=jnp.float32) * 0.02
    conv_bias = jax.random.normal(kb, (E,), dtype=jnp.float32) * 0.02

    # jit so the patch-extraction glue can actually fuse into the input DMA.
    fn = jax.jit(lambda xx, ww, bb: patch_embeddings(xx, ww, bb, P))
    out = jax.block_until_ready(fn(x, conv_weight, conv_bias))

    ref = _reference(x, conv_weight, conv_bias, P)
    assert out.shape == (B, (H // P) * (W // P), E), out.shape
    assert out.dtype == jnp.bfloat16, out.dtype
    # bf16 operands + bf16 output (f32 accumulate) vs. a full-f32 conv
    # reference -> loosened tolerance.
    err = jnp.max(jnp.abs(out.astype(jnp.float32) - ref))
    assert err < 3e-2, f"mismatch vs reference: max abs err {err}"

    print("KERNEL_OK")
</pallas_src>

<mosaic_0001>
module attributes {stable_mosaic.version = 11 : i64} {
  func.func @_patch_embed_kernel(%arg0: i32, %arg1: i32, %arg2: memref<8x192xbf16, #tpu.memory_space<vmem>>, %arg3: memref<192x128xbf16, #tpu.memory_space<vmem>>, %arg4: memref<1x128xf32, #tpu.memory_space<vmem>>, %arg5: memref<8x128xbf16, #tpu.memory_space<vmem>>) attributes {dimension_semantics = [#tpu.dimension_semantics<parallel>, #tpu.dimension_semantics<parallel>], iteration_bounds = array<i64: 1, 1>, scalar_prefetch = 0 : i64, scratch_operands = 0 : i64, tpu.core_type = #tpu.core_type<tc>, window_params = [{transform_indices = @transform_0, window_bounds = array<i64: 8, 192>}, {pipeline_mode = #tpu.pipeline_mode<synchronous>, transform_indices = @transform_1, window_bounds = array<i64: 192, 128>}, {pipeline_mode = #tpu.pipeline_mode<synchronous>, transform_indices = @transform_2, window_bounds = array<i64: 1, 128>}, {transform_indices = @transform_3, window_bounds = array<i64: 8, 128>}]} {
    %c0 = arith.constant 0 : index
    %c0_0 = arith.constant 0 : index
    %0 = vector.load %arg2[%c0, %c0_0] : memref<8x192xbf16, #tpu.memory_space<vmem>>, vector<8x192xbf16>
    %c0_1 = arith.constant 0 : index
    %c0_2 = arith.constant 0 : index
    %1 = vector.load %arg3[%c0_1, %c0_2] : memref<192x128xbf16, #tpu.memory_space<vmem>>, vector<192x128xbf16>
    %cst = arith.constant dense<0.000000e+00> : vector<8x128xf32>
    %2 = tpu.matmul %0, %1, %cst {dimension_numbers = #tpu.dot_dimension_numbers<[1], [0], [0], [1], [0, 0, 1, 1], [], []>} : vector<8x192xbf16>, vector<192x128xbf16>, vector<8x128xf32> -> vector<8x128xf32>
    %c0_3 = arith.constant 0 : index
    %c0_4 = arith.constant 0 : index
    %3 = vector.load %arg4[%c0_3, %c0_4] : memref<1x128xf32, #tpu.memory_space<vmem>>, vector<1x128xf32>
    %4 = vector.broadcast %3 : vector<1x128xf32> to vector<8x128xf32>
    %5 = arith.addf %2, %4 : vector<8x128xf32>
    %6 = arith.truncf %5 : vector<8x128xf32> to vector<8x128xbf16>
    %c0_5 = arith.constant 0 : index
    %c0_6 = arith.constant 0 : index
    %7 = vector.load %arg5[%c0_5, %c0_6] : memref<8x128xbf16, #tpu.memory_space<vmem>>, vector<8x128xbf16>
    tpu.vector_store %arg5[%c0_5, %c0_6], %6 {strides = array<i32>} : memref<8x128xbf16, #tpu.memory_space<vmem>>, vector<8x128xbf16>,
    return
  }
  func.func @transform_0(%arg0: i32, %arg1: i32) -> (i32, i32) {
    %c0_i32 = arith.constant 0 : i32
    %c0_i32_0 = arith.constant 0 : i32
    return %arg0, %c0_i32 : i32, i32
  }
  func.func @transform_1(%arg0: i32, %arg1: i32) -> (i32, i32) {
    %c0_i32 = arith.constant 0 : i32
    %c0_i32_0 = arith.constant 0 : i32
    return %c0_i32, %arg1 : i32, i32
  }
  func.func @transform_2(%arg0: i32, %arg1: i32) -> (i32, i32) {
    %c0_i32 = arith.constant 0 : i32
    %c0_i32_0 = arith.constant 0 : i32
    return %c0_i32, %arg1 : i32, i32
  }
  func.func @transform_3(%arg0: i32, %arg1: i32) -> (i32, i32) {
    %c0_i32 = arith.constant 0 : i32
    return %arg0, %arg1 : i32, i32
  }
}

</mosaic_0001>

<llo_original>
// kernel: _lambda_.1
$region0: #{_lambda_.1}
  #allocation0 [shape = 'u32[]', space=smem, size = 0x4, offset = 0x4, fixed_abs, tag = 'smem constant byte address 0x4 - core index']
  #allocation1 [shape = 'u32[72,128]{1,0:T(1,128)}', space=vmem, size = 0x9000, scoped, tag = 'internal scratch']
  %s0 = inlined_call_operand.vmem [shape: bf16[8,192], index: 0, kind: input, shape index: {}]
  %s1 = inlined_call_operand.vmem [shape: bf16[192,128], index: 1, kind: input, shape index: {}]
  %s2 = inlined_call_operand.vmem [shape: f32[1,128], index: 2, kind: input, shape index: {}]
  %s3 = inlined_call_operand.hbm [shape: bf16[8,128], index: 3, kind: output, shape index: {}]
  %s4 = sld [smem:[#allocation0]]
  $region22: #{_lambda_.1} parent=0
    _
  %s6 = ssub.s32 1, %s4
  %s7 = scalar_select 0, %s6, %s4
  $region1: #{_lambda_.1} parent=0
    #allocation2 [shape = 'u8[2048]{0}', space=vmem, size = 0x800, scoped, tag = 'output window, operand 0, single buffered']
    #allocation3 [shape = 's32[1]{0}', space=sflag, size = 0x4, scoped, tag = 'scoped memory for _lambda_.1']
    %8 = vsyncpa [#allocation3], 0
    // Predicated region
    $region2: #{_lambda_.1} parent=1 // pred_check
      _
    $region3: #{_lambda_.1} parent=1 // pred_check_branch
      %10 = sbr.rel (0) target = $region5
    $region4: #{_lambda_.1} parent=1 // pred_region
      _
    $region5: #{_lambda_.1} parent=1 // pred_fallthru
      _
    // Predicated region
    $region6: #{_lambda_.1} parent=1 // pred_check
      _
    $region7: #{_lambda_.1} parent=1 // pred_check_branch
      %12 = sbr.rel (0) target = $region9
    $region8: #{_lambda_.1} parent=1 // pred_region
      _
    $region9: #{_lambda_.1} parent=1 // pred_fallthru
      _
    // Predicated region
    $region10: #{_lambda_.1} parent=1 // pred_check
      _
    $region11: #{_lambda_.1} parent=1 // pred_check_branch
      %14 = sbr.rel (0) target = $region13
    $region12: #{_lambda_.1} parent=1 // pred_region
      _
    $region13: #{_lambda_.1} parent=1 // pred_fallthru
      _
    %v16 = vld [vmem:[%s0] sm:$0xff]
    %v17 = vld [vmem:[%s1] sm:$0xf]
    %v18 = vld [vmem:[%s1 + $0x4] sm:$0xf]
    %v19 = vld [vmem:[%s1 + $0x8] sm:$0xf]
    %v20 = vld [vmem:[%s1 + $0xc] sm:$0xf]
    %v21 = vld [vmem:[%s1 + $0x10] sm:$0xf]
    %v22 = vld [vmem:[%s1 + $0x14] sm:$0xf]
    %v23 = vld [vmem:[%s1 + $0x18] sm:$0xf]
    %v24 = vld [vmem:[%s1 + $0x1c] sm:$0xf]
    %v25 = vld [vmem:[%s1 + $0x20] sm:$0xf]
    %v26 = vld [vmem:[%s1 + $0x24] sm:$0xf]
    %v27 = vld [vmem:[%s1 + $0x28] sm:$0xf]
    %v28 = vld [vmem:[%s1 + $0x2c] sm:$0xf]
    %v29 = vld [vmem:[%s1 + $0x30] sm:$0xf]
    %v30 = vld [vmem:[%s1 + $0x34] sm:$0xf]
    %v31 = vld [vmem:[%s1 + $0x38] sm:$0xf]
    %v32 = vld [vmem:[%s1 + $0x3c] sm:$0xf]
    %v33 = vld [vmem:[%s1 + $0x40] sm:$0xf]
    %v34 = vld [vmem:[%s1 + $0x44] sm:$0xf]
    %v35 = vld [vmem:[%s1 + $0x48] sm:$0xf]
    %v36 = vld [vmem:[%s1 + $0x4c] sm:$0xf]
    %v37 = vld [vmem:[%s1 + $0x50] sm:$0xf]
    %v38 = vld [vmem:[%s1 + $0x54] sm:$0xf]
    %v39 = vld [vmem:[%s1 + $0x58] sm:$0xf]
    %v40 = vld [vmem:[%s1 + $0x5c] sm:$0xf]
    %v41 = vld [vmem:[%s2] sm:$0x1]
    %v43 = vperm.slane %v41, 0
    %v46 = vunpack.c.l.b16 %v16
    %v47 = vunpack.c.h.b16 %v16
    %v48 = vpack.c.b16 %v46, %v46
    %v49 = vpack.c.b16 %v47, %v47
    %v75 = vunpack.c.l.b16 %v17
    %v76 = vunpack.c.l.b16 %v18
    %v77 = vunpack.c.l.b16 %v19
    %v78 = vunpack.c.l.b16 %v20
    %v79 = vunpack.c.l.b16 %v21
    %v80 = vunpack.c.l.b16 %v22
    %v81 = vunpack.c.l.b16 %v23
    %v82 = vunpack.c.l.b16 %v24
    %v83 = vunpack.c.l.b16 %v25
    %v84 = vunpack.c.l.b16 %v26
    %v85 = vunpack.c.l.b16 %v27
    %v86 = vunpack.c.l.b16 %v28
    %v87 = vunpack.c.l.b16 %v29
    %v88 = vunpack.c.l.b16 %v30
    %v89 = vunpack.c.l.b16 %v31
    %v90 = vunpack.c.l.b16 %v32
    %v91 = vunpack.c.l.b16 %v33
    %v92 = vunpack.c.l.b16 %v34
    %v93 = vunpack.c.l.b16 %v35
    %v94 = vunpack.c.l.b16 %v36
    %v95 = vunpack.c.l.b16 %v37
    %v96 = vunpack.c.l.b16 %v38
    %v97 = vunpack.c.l.b16 %v39
    %v98 = vunpack.c.l.b16 %v40
    %v99 = vpack.c.b16 %v76, %v75
    %v100 = vpack.c.b16 %v78, %v77
    %v101 = vpack.c.b16 %v80, %v79
    %v102 = vpack.c.b16 %v82, %v81
    %v103 = vpack.c.b16 %v84, %v83
    %v104 = vpack.c.b16 %v86, %v85
    %v105 = vpack.c.b16 %v88, %v87
    %v106 = vpack.c.b16 %v90, %v89
    %v107 = vpack.c.b16 %v92, %v91
    %v108 = vpack.c.b16 %v94, %v93
    %v109 = vpack.c.b16 %v96, %v95
    %v110 = vpack.c.b16 %v98, %v97
    %vm123 = vcmask 523264
    %v125 = vsel %vm123, %v49, 0
    %127 = vmatpush.bf16.msra.mxu0 %v106
    %128 = vmatpush.bf16.msra.mxu0 %v105
    %129 = vmatpush.bf16.msra.mxu0 %v104
    %130 = vmatpush.bf16.msra.mxu0 %v103
    %131 = vmatpush.bf16.msra.mxu0 %v102
    %132 = vmatpush.bf16.msra.mxu0 %v101
    %133 = vmatpush.bf16.msra.mxu0 %v100
    %134 = vmatpush.bf16.msra.mxu0 %v99
    %135 = vmatmul.bf16.gmra.mxu0 %v48
    %v136 = vpop.f32.mrf.mxu0
    %v137 = vadd.f32 %v43, %v136
    %v138 = vpop.f32.mrf.mxu0
    %139 = vdwg.mxu0
    %140 = vmatpush.bf16.msra.mxu0 0
    %141 = vmatpush.bf16.msra.mxu0 0
    %142 = vmatpush.bf16.msra.mxu0 0
    %143 = vmatpush.bf16.msra.mxu0 0
    %144 = vmatpush.bf16.msra.mxu0 %v110
    %145 = vmatpush.bf16.msra.mxu0 %v109
    %146 = vmatpush.bf16.msra.mxu0 %v108
    %147 = vmatpush.bf16.msra.mxu0 %v107
    %148 = vmatmul.bf16.gmra.mxu0 %v125
    %v149 = vpop.f32.mrf.mxu0
    %v150 = vadd.f32 %v137, %v149
    %v151 = vpop.f32.mrf.mxu0
    %152 = vdwg.mxu0
    %v153 = vpack.c.bf16 %v150, %v150
    %154 = vst [vmem:[#allocation2] sm:$0xf] %v153
    // Predicated region
    $region14: #{_lambda_.1} parent=1 // pred_check
      _
    $region15: #{_lambda_.1} parent=1 // pred_check_branch
      %156 = sbr.rel (0) target = $region17
    $region16: #{_lambda_.1} parent=1 // pred_region
      %158 = vsyncadd [#allocation3], 0
      %s160 = sshll.u32 [#allocation2], 4
      %s161 = int_to_ptr.vmem [resolvable:$true] %s160
      %s162 = sshll.u32 %s3, 4
      %s163 = int_to_ptr.hbm [resolvable:$true] %s162
      %165 = dma.vmem_to_hbm [thread:$0]  %s161, 64, %s163, [#allocation3]
    $region17: #{_lambda_.1} parent=1 // pred_fallthru
      _
    // Predicated region
    $region18: #{_lambda_.1} parent=1 // pred_check
      _
    $region19: #{_lambda_.1} parent=1 // pred_check_branch
      %167 = sbr.rel (0) target = $region21
    $region20: #{_lambda_.1} parent=1 // pred_region
      %169 = dma.done [#allocation3], 64
    $region21: #{_lambda_.1} parent=1 // pred_fallthru
      _
    %170 = vsyncpa [#allocation3], 1

</llo_original>
